<compile_context>
chip_gen: v5e
topology: v5e:2x2
jax: 0.10.0
libtpu: 0.0.40
codegen_flags: <defaults>
</compile_context>

<pallas_src>
import math
import functools

import jax
import jax.numpy as jnp
from jax.experimental import pallas as pl
from jax.experimental.pallas import tpu as pltpu


def _round_up(n, m):
    return ((n + m - 1) // m) * m


def memory_batch_kernel(sum_ref, h_ref, wkv_ref, qbd_ref, wm_ref, wh_ref,
                        out_ref, *, n_windows, approx_softmax):
    """One batch element per grid step; all heads handled inside the block.

    sum_ref: (NW_pad, DSUM_pad)      zero-padded windowed summaries, batch b
    h_ref:   (1, H, MS, MD)          previous hidden state, batch b
    wkv_ref: (DSUM_pad, N_pad)       fused [Wk_0@Ws_0 | .. | Wv_0@Ws_0 | ..]
    qbd_ref: (H*MS, N_pad)           block-diag const queries / sqrt(MD)
    wm_ref:  (H, MS, MD)             memory_norm RMSNorm weight
    wh_ref:  (H, MS, MD)             h_norm RMSNorm weight
    out_ref: (1, H, MS, MD)          new hidden state, batch b
    """
    n_heads, ms, md = wm_ref.shape

    # (1) Fused K/V projection for ALL heads over this batch's windows:
    #     (NW_pad, DSUM_pad) @ (DSUM_pad, 2*H*MD) -> (NW_pad, 2*H*MD), f32 acc.
    kv = jnp.dot(sum_ref[...], wkv_ref[...],
                 preferred_element_type=jnp.float32)

    # (2) Scores for ALL heads in one matmul via the block-diagonal constant
    #     query matrix (scale 1/sqrt(MD) folded in at init; V lanes are zero).
    scores = jax.lax.dot_general(qbd_ref[...], kv, (((1,), (1,)), ((), ())),
                                 preferred_element_type=jnp.float32)
    # scores: (H*MS, NW_pad)

    # (3) Softmax over the real windows (padding window lanes masked out).
    col = jax.lax.broadcasted_iota(jnp.int32, scores.shape, 1)
    scores = jnp.where(col < n_windows, scores, -jnp.inf)
    m = jnp.max(scores, axis=-1, keepdims=True)
    e = jnp.exp(scores - m)
    denom = jnp.sum(e, axis=-1, keepdims=True)
    if approx_softmax:
        # EUP approx reciprocal instead of a VPU divide (fast bf16 path only).
        p = e * pl.reciprocal(denom, approx=True)
    else:
        p = e / denom

    # (4) P @ V, one full-window matmul per head (heads are static & few;
    #     each is tile-aligned on rows, a 32-lane static slice on xv).
    v0 = n_heads * md
    mems = []
    for h in range(n_heads):
        xv_h = kv[:, v0 + h * md: v0 + (h + 1) * md]        # (NW_pad, MD)
        p_h = p[h * ms:(h + 1) * ms, :]                     # (MS, NW_pad)
        mems.append(jnp.dot(p_h, xv_h, preferred_element_type=jnp.float32))
    mem = jnp.stack(mems, axis=0)                           # (H, MS, MD)

    # (5) RMSNorm (over (MS, MD) per head) + residual + second RMSNorm.
    eps = jnp.float32(jnp.finfo(jnp.float32).eps)           # torch default eps
    inv_n = jnp.float32(1.0 / (ms * md))
    h_prev = h_ref[0]                                       # (H, MS, MD)
    wm = wm_ref[...]
    wh = wh_ref[...]

    ssq_m = jnp.sum(jnp.sum(mem * mem, axis=2, keepdims=True),
                    axis=1, keepdims=True)                  # (H, 1, 1)
    h_new = h_prev + mem * jax.lax.rsqrt(ssq_m * inv_n + eps) * wm
    ssq_h = jnp.sum(jnp.sum(h_new * h_new, axis=2, keepdims=True),
                    axis=1, keepdims=True)
    out_ref[0] = (h_new * jax.lax.rsqrt(ssq_h * inv_n + eps) * wh
                  ).astype(out_ref.dtype)


def _build_summaries(x, pos_embeddings, summary_len, stride):
    """Plain-JAX glue: pos-emb add, zero pad, sliding-window extraction."""
    bsz, seqlen, dim = x.shape
    emblen, _ = pos_embeddings.shape
    assert seqlen < emblen
    x = x + pos_embeddings[None, :seqlen, :]

    st = summary_len if stride is None else stride
    conv_seqlen = seqlen + st - (seqlen - summary_len) % st
    n_windows = (conv_seqlen - summary_len) // st + 1

    seq = jnp.zeros((bsz, conv_seqlen, dim), x.dtype).at[:, :seqlen].set(x)
    windows = [seq[:, i * st:i * st + summary_len] for i in range(n_windows)]
    summary = jnp.stack(windows, axis=1).reshape(bsz, n_windows,
                                                 dim * summary_len)
    return summary, n_windows


def prepare_kernel_params(params, matmul_dtype=jnp.bfloat16):
    """One-time ("init") weight preparation.

    * Fuse the summary projection into K/V:  xk = x @ (Wk @ Ws)^T, etc.
    * Concatenate K over heads then V over heads, pre-transpose and zero-pad to
      (DSUM_pad, N_pad) so ONE matmul covers every head (N in 128 multiples).
    * Build the block-diagonal constant-query matrix Qbd (H*MS, N_pad):
      row h*MS+s carries q_h[s] / sqrt(MD) over head h's K lanes.
    """
    hi = jax.lax.Precision.HIGHEST
    ws, wk, wv, q = params["ws"], params["wk"], params["wv"], params["q"]
    n_heads, ms, md = q.shape
    dsum = ws.shape[-1]

    # NOTE: pre-fusing Wk@Ws / Wv@Ws in f32 then casting to bf16 rounds
    # differently from the reference's two sequential projections (intentional
    # numerical deviation on the fast path).
    wk_f = jnp.einsum("hij,hjd->hid", wk, ws, precision=hi)   # (H, MD, DSUM)
    wv_f = jnp.einsum("hij,hjd->hid", wv, ws, precision=hi)   # (H, MD, DSUM)
    k_cols = jnp.transpose(wk_f, (2, 0, 1)).reshape(dsum, n_heads * md)
    v_cols = jnp.transpose(wv_f, (2, 0, 1)).reshape(dsum, n_heads * md)
    wkv = jnp.concatenate([k_cols, v_cols], axis=1)           # (DSUM, 2*H*MD)

    dsum_pad = _round_up(dsum, 128)
    n_pad = _round_up(2 * n_heads * md, 128)
    wkv_all = jnp.zeros((dsum_pad, n_pad), jnp.float32)
    wkv_all = wkv_all.at[:dsum, :2 * n_heads * md].set(wkv).astype(matmul_dtype)

    qbd = jnp.zeros((n_heads * ms, n_pad), jnp.float32)
    q_s = q.astype(jnp.float32) / math.sqrt(md)
    for h in range(n_heads):
        qbd = qbd.at[h * ms:(h + 1) * ms, h * md:(h + 1) * md].set(q_s[h])

    return {
        "pos_embeddings": params["pos_embeddings"],
        "wkv_all": wkv_all,                                   # (DSUM_pad, N_pad)
        "qbd": qbd,                                           # (H*MS, N_pad)
        "wm": params["w_mnorm"].astype(jnp.float32),          # (H, MS, MD)
        "wh": params["w_hnorm"].astype(jnp.float32),          # (H, MS, MD)
    }


@functools.partial(jax.jit,
                   static_argnames=("summary_len", "stride", "approx_softmax"))
def multi_head_memory_forward(x, hs, kparams, *, summary_len, stride=None,
                              approx_softmax=True):
    bsz, seqlen, dim = x.shape
    summary, n_windows = _build_summaries(x, kparams["pos_embeddings"],
                                          summary_len, stride)
    n_heads, ms, md = kparams["wm"].shape
    dsum = dim * summary_len
    matmul_dtype = kparams["wkv_all"].dtype
    dsum_pad, n_pad = kparams["wkv_all"].shape

    # Pad window rows to the sublane tile of the matmul dtype and DSUM to a
    # multiple of 128 in XLA (free relative to in-kernel relayouts).
    row_tile = 8 if jnp.dtype(matmul_dtype).itemsize >= 4 else 16
    nw_pad = _round_up(n_windows, row_tile)
    summary_p = jnp.zeros((bsz, nw_pad, dsum_pad), matmul_dtype)
    summary_p = summary_p.at[:, :n_windows, :dsum].set(
        summary.astype(matmul_dtype))
    summary_flat = summary_p.reshape(bsz * nw_pad, dsum_pad)

    hs_f = hs.astype(jnp.float32)                   # (bsz, H, MS, MD)

    kernel = functools.partial(memory_batch_kernel,
                               n_windows=n_windows,
                               approx_softmax=approx_softmax)

    out = pl.pallas_call(
        kernel,
        out_shape=jax.ShapeDtypeStruct((bsz, n_heads, ms, md), jnp.float32),
        grid_spec=pltpu.PrefetchScalarGridSpec(
            num_scalar_prefetch=0,
            grid=(bsz,),
            in_specs=[
                # per-batch window slab (changes every step -> double-buffer)
                pl.BlockSpec((nw_pad, dsum_pad), lambda b: (b, 0)),
                # per-batch previous hidden state, all heads
                pl.BlockSpec((1, n_heads, ms, md), lambda b: (b, 0, 0, 0)),
                # shared constants: untiled full-array blocks
                pl.BlockSpec((dsum_pad, n_pad), lambda b: (0, 0)),
                pl.BlockSpec((n_heads * ms, n_pad), lambda b: (0, 0)),
                pl.BlockSpec((n_heads, ms, md), lambda b: (0, 0, 0)),
                pl.BlockSpec((n_heads, ms, md), lambda b: (0, 0, 0)),
            ],
            out_specs=pl.BlockSpec((1, n_heads, ms, md),
                                   lambda b: (b, 0, 0, 0)),
        ),
        compiler_params=pltpu.CompilerParams(
            dimension_semantics=("parallel",),      # batch steps -> megacore
            vmem_limit_bytes=48 * 1024 * 1024,      # < 64 MiB v7x physical
        ),
    )(summary_flat, hs_f, kparams["wkv_all"], kparams["qbd"],
      kparams["wm"], kparams["wh"])

    # Output is already (bsz, n_heads, MS, MD) — no post-kernel relayout.
    return out


def reference_forward(x, hs, params, *, summary_len, stride=None):
    """Pure-JAX reference of MultiHeadMemory.forward for correctness check."""
    summary, _ = _build_summaries(x, params["pos_embeddings"], summary_len,
                                  stride)
    n_heads, ms, md = params["q"].shape
    eps = jnp.finfo(jnp.float32).eps
    hi = jax.lax.Precision.HIGHEST
    outs = []
    for i in range(n_heads):
        emb = jnp.einsum("bnd,md->bnm", summary, params["ws"][i], precision=hi)
        xk = jnp.einsum("bnm,km->bnk", emb, params["wk"][i], precision=hi)
        xv = jnp.einsum("bnm,km->bnk", emb, params["wv"][i], precision=hi)
        scores = jnp.einsum("sk,bnk->bsn", params["q"][i], xk,
                            precision=hi) / math.sqrt(md)
        p = jax.nn.softmax(scores, axis=-1)
        mem = jnp.einsum("bsn,bnk->bsk", p, xv, precision=hi)
        mem_n = mem * jax.lax.rsqrt(
            jnp.mean(mem * mem, axis=(1, 2), keepdims=True) + eps
        ) * params["w_mnorm"][i]
        h_new = hs[:, i] + mem_n
        out = h_new * jax.lax.rsqrt(
            jnp.mean(h_new * h_new, axis=(1, 2), keepdims=True) + eps
        ) * params["w_hnorm"][i]
        outs.append(out)
    return jnp.stack(outs, axis=1)


def init_params(key, *, max_seq_len, n_heads, dim, memory_size, memory_dim,
                summary_len):
    """Deterministic synthetic parameter init (shapes match the torch module)."""
    dsum = dim * summary_len
    ks = jax.random.split(key, 6)
    params = {
        "pos_embeddings": jax.random.normal(ks[0], (max_seq_len, dim),
                                            jnp.float32),
        # per-head Linear weights (torch layout: (out_features, in_features))
        "ws": jax.random.normal(ks[1], (n_heads, memory_dim, dsum),
                                jnp.float32) / math.sqrt(dsum),
        "wk": jax.random.normal(ks[2], (n_heads, memory_dim, memory_dim),
                                jnp.float32) / math.sqrt(memory_dim),
        "wv": jax.random.normal(ks[3], (n_heads, memory_dim, memory_dim),
                                jnp.float32) / math.sqrt(memory_dim),
        "q": jax.random.normal(ks[4], (n_heads, memory_size, memory_dim),
                               jnp.float32),
        "w_mnorm": jnp.ones((n_heads, memory_size, memory_dim), jnp.float32),
        "w_hnorm": jnp.ones((n_heads, memory_size, memory_dim), jnp.float32),
    }
    return params


def _check(name, got, ref, atol, rtol):
    err = float(jnp.max(jnp.abs(got - ref)))
    assert jnp.allclose(got, ref, atol=atol, rtol=rtol), (name, err)


if __name__ == "__main__":
    # Small, module-consistent shapes.
    max_seq_len = 32
    n_heads = 2
    dim = 8
    memory_size = 8
    memory_dim = 32
    summary_len = 4
    stride = None          # defaults to summary_len inside Memory

    bsz = 2
    seqlen = 10            # must be < max_seq_len

    key = jax.random.PRNGKey(0)
    kx, kh, kp = jax.random.split(key, 3)
    x = jax.random.normal(kx, (bsz, seqlen, dim), jnp.float32)
    hs = jax.random.normal(kh, (bsz, n_heads, memory_size, memory_dim),
                           jnp.float32)
    params = init_params(kp, max_seq_len=max_seq_len, n_heads=n_heads, dim=dim,
                         memory_size=memory_size, memory_dim=memory_dim,
                         summary_len=summary_len)

    ref = reference_forward(x, hs, params, summary_len=summary_len,
                            stride=stride)

    # f32 matmul path with exact softmax divide: tight numerical check.
    kp_f32 = prepare_kernel_params(params, matmul_dtype=jnp.float32)
    out_f32 = multi_head_memory_forward(x, hs, kp_f32,
                                        summary_len=summary_len, stride=stride,
                                        approx_softmax=False)
    out_f32 = jax.block_until_ready(out_f32)
    assert out_f32.shape == (bsz, n_heads, memory_size, memory_dim)
    _check("f32", out_f32, ref, atol=1e-3, rtol=1e-3)

    # bf16 matmul fast path (approx reciprocal on EUP): wider tolerance.
    kp_bf16 = prepare_kernel_params(params, matmul_dtype=jnp.bfloat16)
    out_bf16 = multi_head_memory_forward(x, hs, kp_bf16,
                                         summary_len=summary_len,
                                         stride=stride, approx_softmax=True)
    out_bf16 = jax.block_until_ready(out_bf16)
    assert out_bf16.shape == (bsz, n_heads, memory_size, memory_dim)
    _check("bf16", out_bf16, ref, atol=5e-2, rtol=5e-2)

    print("KERNEL_OK")
</pallas_src>

<mosaic_0001>
module attributes {stable_mosaic.version = 11 : i64} {
  func.func @memory_batch_kernel(%arg0: i32, %arg1: memref<8x128xf32, #tpu.memory_space<vmem>>, %arg2: memref<1x2x8x32xf32, #tpu.memory_space<vmem>>, %arg3: memref<128x128xf32, #tpu.memory_space<vmem>>, %arg4: memref<16x128xf32, #tpu.memory_space<vmem>>, %arg5: memref<2x8x32xf32, #tpu.memory_space<vmem>>, %arg6: memref<2x8x32xf32, #tpu.memory_space<vmem>>, %arg7: memref<1x2x8x32xf32, #tpu.memory_space<vmem>>) attributes {dimension_semantics = [#tpu.dimension_semantics<parallel>], iteration_bounds = array<i64: 2>, scalar_prefetch = 0 : i64, scratch_operands = 0 : i64, tpu.core_type = #tpu.core_type<tc>, window_params = [{transform_indices = @transform_0, window_bounds = array<i64: 8, 128>}, {transform_indices = @transform_1, window_bounds = array<i64: 1, 2, 8, 32>}, {pipeline_mode = #tpu.pipeline_mode<synchronous>, transform_indices = @transform_2, window_bounds = array<i64: 128, 128>}, {pipeline_mode = #tpu.pipeline_mode<synchronous>, transform_indices = @transform_3, window_bounds = array<i64: 16, 128>}, {pipeline_mode = #tpu.pipeline_mode<synchronous>, transform_indices = @transform_4, window_bounds = array<i64: 2, 8, 32>}, {pipeline_mode = #tpu.pipeline_mode<synchronous>, transform_indices = @transform_5, window_bounds = array<i64: 2, 8, 32>}, {transform_indices = @transform_6, window_bounds = array<i64: 1, 2, 8, 32>}]} {
    %c0 = arith.constant 0 : index
    %c0_0 = arith.constant 0 : index
    %0 = vector.load %arg1[%c0, %c0_0] : memref<8x128xf32, #tpu.memory_space<vmem>>, vector<8x128xf32>
    %c0_1 = arith.constant 0 : index
    %c0_2 = arith.constant 0 : index
    %1 = vector.load %arg3[%c0_1, %c0_2] : memref<128x128xf32, #tpu.memory_space<vmem>>, vector<128x128xf32>
    %cst = arith.constant dense<0.000000e+00> : vector<8x128xf32>
    %2 = tpu.matmul %0, %1, %cst {dimension_numbers = #tpu.dot_dimension_numbers<[1], [0], [0], [1], [0, 0, 1, 1], [], []>} : vector<8x128xf32>, vector<128x128xf32>, vector<8x128xf32> -> vector<8x128xf32>
    %c0_3 = arith.constant 0 : index
    %c0_4 = arith.constant 0 : index
    %3 = vector.load %arg4[%c0_3, %c0_4] : memref<16x128xf32, #tpu.memory_space<vmem>>, vector<16x128xf32>
    %cst_5 = arith.constant dense<0.000000e+00> : vector<16x8xf32>
    %4 = tpu.matmul %3, %2, %cst_5 {dimension_numbers = #tpu.dot_dimension_numbers<[1], [1], [0], [0], [0, 0, 1, 0], [], []>} : vector<16x128xf32>, vector<8x128xf32>, vector<16x8xf32> -> vector<16x8xf32>
    %5 = tpu.iota {dimensions = array<i32: 1>} : vector<16x8xi32>
    %c3_i32 = arith.constant 3 : i32
    %6 = vector.broadcast %c3_i32 : i32 to vector<16x8xi32>
    %7 = arith.cmpi slt, %5, %6 : vector<16x8xi32>
    %cst_6 = arith.constant 0xFF800000 : f32
    %8 = vector.broadcast %cst_6 : f32 to vector<16x8xf32>
    %9 = arith.select %7, %4, %8 : vector<16x8xi1>, vector<16x8xf32>
    %cst_7 = arith.constant dense<0xFF800000> : vector<16xf32>
    %10 = vector.multi_reduction <maximumf>, %9, %cst_7 [1] : vector<16x8xf32> to vector<16xf32>
    %11 = vector.shape_cast %10 : vector<16xf32> to vector<16x1xf32>
    %12 = vector.broadcast %11 : vector<16x1xf32> to vector<16x8xf32>
    %13 = arith.subf %9, %12 : vector<16x8xf32>
    %14 = math.exp %13 : vector<16x8xf32>
    %cst_8 = arith.constant dense<0.000000e+00> : vector<16xf32>
    %15 = vector.multi_reduction <add>, %14, %cst_8 [1] : vector<16x8xf32> to vector<16xf32>
    %16 = vector.shape_cast %15 : vector<16xf32> to vector<16x1xf32>
    %17 = vector.broadcast %16 : vector<16x1xf32> to vector<16x8xf32>
    %18 = arith.divf %14, %17 : vector<16x8xf32>
    %19 = vector.extract_strided_slice %2 {offsets = [0, 64], sizes = [8, 32], strides = [1, 1]} : vector<8x128xf32> to vector<8x32xf32>
    %20 = vector.extract_strided_slice %18 {offsets = [0, 0], sizes = [8, 8], strides = [1, 1]} : vector<16x8xf32> to vector<8x8xf32>
    %cst_9 = arith.constant dense<0.000000e+00> : vector<8x32xf32>
    %21 = tpu.matmul %20, %19, %cst_9 {dimension_numbers = #tpu.dot_dimension_numbers<[1], [0], [0], [1], [0, 0, 1, 1], [], []>} : vector<8x8xf32>, vector<8x32xf32>, vector<8x32xf32> -> vector<8x32xf32>
    %22 = vector.extract_strided_slice %2 {offsets = [0, 96], sizes = [8, 32], strides = [1, 1]} : vector<8x128xf32> to vector<8x32xf32>
    %23 = vector.extract_strided_slice %18 {offsets = [8, 0], sizes = [8, 8], strides = [1, 1]} : vector<16x8xf32> to vector<8x8xf32>
    %cst_10 = arith.constant dense<0.000000e+00> : vector<8x32xf32>
    %24 = tpu.matmul %23, %22, %cst_10 {dimension_numbers = #tpu.dot_dimension_numbers<[1], [0], [0], [1], [0, 0, 1, 1], [], []>} : vector<8x8xf32>, vector<8x32xf32>, vector<8x32xf32> -> vector<8x32xf32>
    %25 = vector.shape_cast %21 : vector<8x32xf32> to vector<1x8x32xf32>
    %26 = vector.shape_cast %24 : vector<8x32xf32> to vector<1x8x32xf32>
    %27 = tpu.concatenate %25, %26 in 0 : vector<1x8x32xf32>, vector<1x8x32xf32> -> vector<2x8x32xf32>
    %c0_11 = arith.constant 0 : index
    %c0_12 = arith.constant 0 : index
    %c0_13 = arith.constant 0 : index
    %c0_14 = arith.constant 0 : index
    %28 = vector.load %arg2[%c0_11, %c0_12, %c0_13, %c0_14] : memref<1x2x8x32xf32, #tpu.memory_space<vmem>>, vector<1x2x8x32xf32>
    %29 = vector.shape_cast %28 : vector<1x2x8x32xf32> to vector<2x8x32xf32>
    %c0_15 = arith.constant 0 : index
    %c0_16 = arith.constant 0 : index
    %c0_17 = arith.constant 0 : index
    %30 = vector.load %arg5[%c0_15, %c0_16, %c0_17] : memref<2x8x32xf32, #tpu.memory_space<vmem>>, vector<2x8x32xf32>
    %c0_18 = arith.constant 0 : index
    %c0_19 = arith.constant 0 : index
    %c0_20 = arith.constant 0 : index
    %31 = vector.load %arg6[%c0_18, %c0_19, %c0_20] : memref<2x8x32xf32, #tpu.memory_space<vmem>>, vector<2x8x32xf32>
    %32 = arith.mulf %27, %27 : vector<2x8x32xf32>
    %cst_21 = arith.constant dense<0.000000e+00> : vector<2x8xf32>
    %33 = vector.multi_reduction <add>, %32, %cst_21 [2] : vector<2x8x32xf32> to vector<2x8xf32>
    %34 = vector.shape_cast %33 : vector<2x8xf32> to vector<2x8x1xf32>
    %cst_22 = arith.constant dense<0.000000e+00> : vector<2x1xf32>
    %35 = vector.multi_reduction <add>, %34, %cst_22 [1] : vector<2x8x1xf32> to vector<2x1xf32>
    %36 = vector.shape_cast %35 : vector<2x1xf32> to vector<2x1x1xf32>
    %cst_23 = arith.constant 3.906250e-03 : f32
    %37 = vector.broadcast %cst_23 : f32 to vector<2x1x1xf32>
    %38 = arith.mulf %36, %37 : vector<2x1x1xf32>
    %cst_24 = arith.constant 1.1920929E-7 : f32
    %39 = vector.broadcast %cst_24 : f32 to vector<2x1x1xf32>
    %40 = arith.addf %38, %39 : vector<2x1x1xf32>
    %41 = math.rsqrt %40 : vector<2x1x1xf32>
    %42 = vector.broadcast %41 : vector<2x1x1xf32> to vector<2x8x32xf32>
    %43 = arith.mulf %27, %42 : vector<2x8x32xf32>
    %44 = arith.mulf %43, %30 : vector<2x8x32xf32>
    %45 = arith.addf %29, %44 : vector<2x8x32xf32>
    %46 = arith.mulf %45, %45 : vector<2x8x32xf32>
    %cst_25 = arith.constant dense<0.000000e+00> : vector<2x8xf32>
    %47 = vector.multi_reduction <add>, %46, %cst_25 [2] : vector<2x8x32xf32> to vector<2x8xf32>
    %48 = vector.shape_cast %47 : vector<2x8xf32> to vector<2x8x1xf32>
    %cst_26 = arith.constant dense<0.000000e+00> : vector<2x1xf32>
    %49 = vector.multi_reduction <add>, %48, %cst_26 [1] : vector<2x8x1xf32> to vector<2x1xf32>
    %50 = vector.shape_cast %49 : vector<2x1xf32> to vector<2x1x1xf32>
    %cst_27 = arith.constant 3.906250e-03 : f32
    %51 = vector.broadcast %cst_27 : f32 to vector<2x1x1xf32>
    %52 = arith.mulf %50, %51 : vector<2x1x1xf32>
    %cst_28 = arith.constant 1.1920929E-7 : f32
    %53 = vector.broadcast %cst_28 : f32 to vector<2x1x1xf32>
    %54 = arith.addf %52, %53 : vector<2x1x1xf32>
    %55 = math.rsqrt %54 : vector<2x1x1xf32>
    %56 = vector.broadcast %55 : vector<2x1x1xf32> to vector<2x8x32xf32>
    %57 = arith.mulf %45, %56 : vector<2x8x32xf32>
    %58 = arith.mulf %57, %31 : vector<2x8x32xf32>
    %c0_29 = arith.constant 0 : index
    %c0_30 = arith.constant 0 : index
    %c0_31 = arith.constant 0 : index
    %c0_32 = arith.constant 0 : index
    %59 = vector.load %arg7[%c0_29, %c0_30, %c0_31, %c0_32] : memref<1x2x8x32xf32, #tpu.memory_space<vmem>>, vector<1x2x8x32xf32>
    %60 = vector.shape_cast %59 : vector<1x2x8x32xf32> to vector<2x8x32xf32>
    %61 = vector.shape_cast %58 : vector<2x8x32xf32> to vector<1x2x8x32xf32>
    tpu.vector_store %arg7[%c0_29, %c0_30, %c0_31, %c0_32], %61 {strides = array<i32>} : memref<1x2x8x32xf32, #tpu.memory_space<vmem>>, vector<1x2x8x32xf32>,
    return
  }
  func.func @transform_0(%arg0: i32) -> (i32, i32) {
    %c0_i32 = arith.constant 0 : i32
    %c0_i32_0 = arith.constant 0 : i32
    return %arg0, %c0_i32 : i32, i32
  }
  func.func @transform_1(%arg0: i32) -> (i32, i32, i32, i32) {
    %c0_i32 = arith.constant 0 : i32
    %c0_i32_0 = arith.constant 0 : i32
    %c0_i32_1 = arith.constant 0 : i32
    %c0_i32_2 = arith.constant 0 : i32
    return %arg0, %c0_i32, %c0_i32_0, %c0_i32_1 : i32, i32, i32, i32
  }
  func.func @transform_2(%arg0: i32) -> (i32, i32) {
    %c0_i32 = arith.constant 0 : i32
    %c0_i32_0 = arith.constant 0 : i32
    %c0_i32_1 = arith.constant 0 : i32
    return %c0_i32, %c0_i32_0 : i32, i32
  }
  func.func @transform_3(%arg0: i32) -> (i32, i32) {
    %c0_i32 = arith.constant 0 : i32
    %c0_i32_0 = arith.constant 0 : i32
    %c0_i32_1 = arith.constant 0 : i32
    return %c0_i32, %c0_i32_0 : i32, i32
  }
  func.func @transform_4(%arg0: i32) -> (i32, i32, i32) {
    %c0_i32 = arith.constant 0 : i32
    %c0_i32_0 = arith.constant 0 : i32
    %c0_i32_1 = arith.constant 0 : i32
    %c0_i32_2 = arith.constant 0 : i32
    return %c0_i32, %c0_i32_0, %c0_i32_1 : i32, i32, i32
  }
  func.func @transform_5(%arg0: i32) -> (i32, i32, i32) {
    %c0_i32 = arith.constant 0 : i32
    %c0_i32_0 = arith.constant 0 : i32
    %c0_i32_1 = arith.constant 0 : i32
    %c0_i32_2 = arith.constant 0 : i32
    return %c0_i32, %c0_i32_0, %c0_i32_1 : i32, i32, i32
  }
  func.func @transform_6(%arg0: i32) -> (i32, i32, i32, i32) {
    %c0_i32 = arith.constant 0 : i32
    %c0_i32_0 = arith.constant 0 : i32
    %c0_i32_1 = arith.constant 0 : i32
    %c0_i32_2 = arith.constant 0 : i32
    return %arg0, %c0_i32, %c0_i32_0, %c0_i32_1 : i32, i32, i32, i32
  }
}

</mosaic_0001>

<llo_original>
// kernel: multi_head_memory_forward.1
$region0: #{multi_head_memory_forward.1}
  #allocation0 [shape = 'u32[]', space=smem, size = 0x4, offset = 0x4, fixed_abs, tag = 'smem constant byte address 0x4 - core index']
  #allocation1 [shape = 'u32[72,128]{1,0:T(1,128)}', space=vmem, size = 0x9000, scoped, tag = 'internal scratch']
  %s0 = inlined_call_operand.vmem [shape: f32[16,128], index: 0, kind: input, shape index: {}]
  %s1 = inlined_call_operand.vmem [shape: f32[2,2,8,32], index: 1, kind: input, shape index: {}]
  %s2 = inlined_call_operand.vmem [shape: f32[128,128], index: 2, kind: input, shape index: {}]
  %s3 = inlined_call_operand.vmem [shape: f32[16,128], index: 3, kind: input, shape index: {}]
  %s4 = inlined_call_operand.vmem [shape: f32[2,8,32], index: 4, kind: input, shape index: {}]
  %s5 = inlined_call_operand.vmem [shape: f32[2,8,32], index: 5, kind: input, shape index: {}]
  %s6 = inlined_call_operand.hbm [shape: f32[2,2,8,32], index: 6, kind: output, shape index: {}]
  %s7 = sld [smem:[#allocation0]]
  $region57: #{multi_head_memory_forward.1} parent=0
    _
  %s9 = ssub.s32 1, %s7
  %s10 = scalar_select 0, %s9, %s7
  $region1: #{multi_head_memory_forward.1} parent=0
    #allocation2 [shape = 'u8[16384]{0}', space=vmem, size = 0x4000, scoped, tag = 'output window, operand 0']
    #allocation3 [shape = 's32[2]{0}', space=sflag, size = 0x8, scoped, tag = 'scoped memory for multi_head_memory_forward.1']
    %11 = vsyncpa [#allocation3], 0
    %s12 = scalar_lea.sflag [#allocation3], 1
    %13 = vsyncpa %s12, 0
    loop: start=0, step=1, limit=4
    $region2: #{multi_head_memory_forward.1} parent=1 // loop_pre_header
      _
    $region3: #{multi_head_memory_forward.1} parent=1 // loop_header
      %s15 = sphi 0, %s19
      %p16 = scmp.ge.s32.totalorder %s15, 4
      %s25 = sphi 0, %s27
      %s28 = sphi 0, %s25
      %s29 = sphi 0, %s28
      %s45 = sphi 0, %s29
      %s51 = sphi 0, %s53
      %s54 = sphi 0, %s51
      %s55 = sphi 0, %s54
      %s71 = sphi 0, %s55
      %s75 = sphi 0, %s75
      %s77 = sphi 0, %s75
      %s78 = sphi 0, %s77
      %s92 = sphi 0, %s78
      %s96 = sphi 0, %s96
      %s98 = sphi 0, %s96
      %s99 = sphi 0, %s98
      %s113 = sphi 0, %s99
      %s117 = sphi 0, %s117
      %s119 = sphi 0, %s117
      %s120 = sphi 0, %s119
      %s134 = sphi 0, %s120
      %s138 = sphi 0, %s138
      %s140 = sphi 0, %s138
      %s141 = sphi 0, %s140
      %s155 = sphi 0, %s141
      %s161 = sphi 0, %s163
      %s164 = sphi 0, %s161
      %s165 = sphi 0, %s164
      %s181 = sphi 0, %s165
    $region4: #{multi_head_memory_forward.1} parent=1 // loop_header_branch
      %18 = sbr.rel (%p16) target = $region8
    $region5: #{multi_head_memory_forward.1} parent=1 // loop_body
      %s20 = ssub.s32 %s15, 1
      %s21 = ssub.s32 %s15, 2
      %s22 = sadd.s32 %s15, 1
      %s23 = ssub.s32 %s15, %s22
      %p24 = scmp.eq.s32.totalorder %s23, 0
      %s26 = sadd.s32 %s25, 1
      %s27 = scalar_select %p24, %s25, %s26
      %p30 = pneg %p24
      %p31 = scmp.eq.s32.totalorder %s15, 1
      %p32 = por %p30, %p31
      %p33 = scmp.ne.s32.totalorder %s25, %s28
      %p34 = scmp.eq.s32.totalorder %s15, 0
      %p35 = por %p33, %p34
      %p36 = scmp.ne.s32.totalorder %s25, %s28
      %p37 = scmp.eq.s32.totalorder %s20, 1
      %p38 = por %p36, %p37
      %p39 = scmp.ne.s32.totalorder %s28, %s29
      %p40 = scmp.eq.s32.totalorder %s20, 0
      %p41 = por %p39, %p40
      %p42 = scmp.ne.s32.totalorder %s28, %s29
      %p43 = scmp.eq.s32.totalorder %s21, 1
      %p44 = por %p42, %p43
      %p46 = scmp.ne.s32.totalorder %s29, %s45
      %p47 = scmp.eq.s32.totalorder %s21, 0
      %p48 = por %p46, %p47
      %s49 = ssub.s32 %s15, %s22
      %p50 = scmp.eq.s32.totalorder %s49, 0
      %s52 = sadd.s32 %s51, 1
      %s53 = scalar_select %p50, %s51, %s52
      %p56 = pneg %p50
      %p57 = scmp.eq.s32.totalorder %s15, 1
      %p58 = por %p56, %p57
      %p59 = scmp.ne.s32.totalorder %s51, %s54
      %p60 = scmp.eq.s32.totalorder %s15, 0
      %p61 = por %p59, %p60
      %p62 = scmp.ne.s32.totalorder %s51, %s54
      %p63 = scmp.eq.s32.totalorder %s20, 1
      %p64 = por %p62, %p63
      %p65 = scmp.ne.s32.totalorder %s54, %s55
      %p66 = scmp.eq.s32.totalorder %s20, 0
      %p67 = por %p65, %p66
      %p68 = scmp.ne.s32.totalorder %s54, %s55
      %p69 = scmp.eq.s32.totalorder %s21, 1
      %p70 = por %p68, %p69
      %p72 = scmp.ne.s32.totalorder %s55, %s71
      %p73 = scmp.eq.s32.totalorder %s21, 0
      %p74 = por %p72, %p73
      %s76 = sadd.s32 %s75, 1
      %p79 = scmp.eq.s32.totalorder %s15, 1
      %p80 = scmp.ne.s32.totalorder %s75, %s77
      %p81 = scmp.eq.s32.totalorder %s15, 0
      %p82 = por %p80, %p81
      %p83 = scmp.ne.s32.totalorder %s75, %s77
      %p84 = scmp.eq.s32.totalorder %s20, 1
      %p85 = por %p83, %p84
      %p86 = scmp.ne.s32.totalorder %s77, %s78
      %p87 = scmp.eq.s32.totalorder %s20, 0
      %p88 = por %p86, %p87
      %p89 = scmp.ne.s32.totalorder %s77, %s78
      %p90 = scmp.eq.s32.totalorder %s21, 1
      %p91 = por %p89, %p90
      %p93 = scmp.ne.s32.totalorder %s78, %s92
      %p94 = scmp.eq.s32.totalorder %s21, 0
      %p95 = por %p93, %p94
      %s97 = sadd.s32 %s96, 1
      %p100 = scmp.eq.s32.totalorder %s15, 1
      %p101 = scmp.ne.s32.totalorder %s96, %s98
      %p102 = scmp.eq.s32.totalorder %s15, 0
      %p103 = por %p101, %p102
      %p104 = scmp.ne.s32.totalorder %s96, %s98
      %p105 = scmp.eq.s32.totalorder %s20, 1
      %p106 = por %p104, %p105
      %p107 = scmp.ne.s32.totalorder %s98, %s99
      %p108 = scmp.eq.s32.totalorder %s20, 0
      %p109 = por %p107, %p108
      %p110 = scmp.ne.s32.totalorder %s98, %s99
      %p111 = scmp.eq.s32.totalorder %s21, 1
      %p112 = por %p110, %p111
      %p114 = scmp.ne.s32.totalorder %s99, %s113
      %p115 = scmp.eq.s32.totalorder %s21, 0
      %p116 = por %p114, %p115
      %s118 = sadd.s32 %s117, 1
      %p121 = scmp.eq.s32.totalorder %s15, 1
      %p122 = scmp.ne.s32.totalorder %s117, %s119
      %p123 = scmp.eq.s32.totalorder %s15, 0
      %p124 = por %p122, %p123
      %p125 = scmp.ne.s32.totalorder %s117, %s119
      %p126 = scmp.eq.s32.totalorder %s20, 1
      %p127 = por %p125, %p126
      %p128 = scmp.ne.s32.totalorder %s119, %s120
      %p129 = scmp.eq.s32.totalorder %s20, 0
      %p130 = por %p128, %p129
      %p131 = scmp.ne.s32.totalorder %s119, %s120
      %p132 = scmp.eq.s32.totalorder %s21, 1
      %p133 = por %p131, %p132
      %p135 = scmp.ne.s32.totalorder %s120, %s134
      %p136 = scmp.eq.s32.totalorder %s21, 0
      %p137 = por %p135, %p136
      %s139 = sadd.s32 %s138, 1
      %p142 = scmp.eq.s32.totalorder %s15, 1
      %p143 = scmp.ne.s32.totalorder %s138, %s140
      %p144 = scmp.eq.s32.totalorder %s15, 0
      %p145 = por %p143, %p144
      %p146 = scmp.ne.s32.totalorder %s138, %s140
      %p147 = scmp.eq.s32.totalorder %s20, 1
      %p148 = por %p146, %p147
      %p149 = scmp.ne.s32.totalorder %s140, %s141
      %p150 = scmp.eq.s32.totalorder %s20, 0
      %p151 = por %p149, %p150
      %p152 = scmp.ne.s32.totalorder %s140, %s141
      %p153 = scmp.eq.s32.totalorder %s21, 1
      %p154 = por %p152, %p153
      %p156 = scmp.ne.s32.totalorder %s141, %s155
      %p157 = scmp.eq.s32.totalorder %s21, 0
      %p158 = por %p156, %p157
      %s159 = ssub.s32 %s15, %s22
      %p160 = scmp.eq.s32.totalorder %s159, 0
      %s162 = sadd.s32 %s161, 1
      %s163 = scalar_select %p160, %s161, %s162
      %p166 = pneg %p160
      %p167 = scmp.eq.s32.totalorder %s15, 1
      %p168 = por %p166, %p167
      %p169 = scmp.ne.s32.totalorder %s161, %s164
      %p170 = scmp.eq.s32.totalorder %s15, 0
      %p171 = por %p169, %p170
      %p172 = scmp.ne.s32.totalorder %s161, %s164
      %p173 = scmp.eq.s32.totalorder %s20, 1
      %p174 = por %p172, %p173
      %p175 = scmp.ne.s32.totalorder %s164, %s165
      %p176 = scmp.eq.s32.totalorder %s20, 0
      %p177 = por %p175, %p176
      %p178 = scmp.ne.s32.totalorder %s164, %s165
      %p179 = scmp.eq.s32.totalorder %s21, 1
      %p180 = por %p178, %p179
      %p182 = scmp.ne.s32.totalorder %s165, %s181
      %p183 = scmp.eq.s32.totalorder %s21, 0
      %p184 = por %p182, %p183
      %p185 = scmp.le.s32.totalorder 1, %s15
      %p186 = scmp.lt.s32.totalorder %s15, 3
      %p187 = pnand %p185, %p186
      %p188 = pneg %p187
      // Predicated region
      $region9: #{multi_head_memory_forward.1} parent=5 // pred_check
        _
      $region10: #{multi_head_memory_forward.1} parent=5 // pred_check_branch
        %190 = sbr.rel (%p187) target = $region12
      $region11: #{multi_head_memory_forward.1} parent=5 // pred_region
        %s191 = ssub.s32 %s15, 1
        // Predicated region
        $region13: #{multi_head_memory_forward.1} parent=11 // pred_check
          %p192 = pneg %p88
        $region14: #{multi_head_memory_forward.1} parent=11 // pred_check_branch
          %194 = sbr.rel (%p192) target = $region16
        $region15: #{multi_head_memory_forward.1} parent=11 // pred_region
          _
        $region16: #{multi_head_memory_forward.1} parent=11 // pred_fallthru
          _
        // Predicated region
        $region17: #{multi_head_memory_forward.1} parent=11 // pred_check
          %p195 = pneg %p109
        $region18: #{multi_head_memory_forward.1} parent=11 // pred_check_branch
          %197 = sbr.rel (%p195) target = $region20
        $region19: #{multi_head_memory_forward.1} parent=11 // pred_region
          _
        $region20: #{multi_head_memory_forward.1} parent=11 // pred_fallthru
          _
        // Predicated region
        $region21: #{multi_head_memory_forward.1} parent=11 // pred_check
          %p198 = pneg %p130
        $region22: #{multi_head_memory_forward.1} parent=11 // pred_check_branch
          %200 = sbr.rel (%p198) target = $region24
        $region23: #{multi_head_memory_forward.1} parent=11 // pred_region
          _
        $region24: #{multi_head_memory_forward.1} parent=11 // pred_fallthru
          _
        // Predicated region
        $region25: #{multi_head_memory_forward.1} parent=11 // pred_check
          %p201 = pneg %p151
        $region26: #{multi_head_memory_forward.1} parent=11 // pred_check_branch
          %203 = sbr.rel (%p201) target = $region28
        $region27: #{multi_head_memory_forward.1} parent=11 // pred_region
          _
        $region28: #{multi_head_memory_forward.1} parent=11 // pred_fallthru
          _
      $region12: #{multi_head_memory_forward.1} parent=5 // pred_fallthru
        _
      %p204 = scmp.lt.s32.totalorder %s15, 2
      // Predicated region
      $region29: #{multi_head_memory_forward.1} parent=5 // pred_check
        %p205 = pneg %p204
      $region30: #{multi_head_memory_forward.1} parent=5 // pred_check_branch
        %207 = sbr.rel (%p205) target = $region32
      $region31: #{multi_head_memory_forward.1} parent=5 // pred_region
        // Predicated region
        $region33: #{multi_head_memory_forward.1} parent=31 // pred_check
          %p208 = pneg %p35
        $region34: #{multi_head_memory_forward.1} parent=31 // pred_check_branch
          %210 = sbr.rel (%p208) target = $region36
        $region35: #{multi_head_memory_forward.1} parent=31 // pred_region
          %p211 = scmp.lt.s32.totalorder %s15, 1
          %s212 = scalar_select %p211, %s15, 1
          %s213 = smul.addr %s212, 8
          %s214 = scalar_lea.vmem %s0, %s213
        $region36: #{multi_head_memory_forward.1} parent=31 // pred_fallthru
          _
        // Predicated region
        $region37: #{multi_head_memory_forward.1} parent=31 // pred_check
          %p215 = pneg %p61
        $region38: #{multi_head_memory_forward.1} parent=31 // pred_check_branch
          %217 = sbr.rel (%p215) target = $region40
        $region39: #{multi_head_memory_forward.1} parent=31 // pred_region
          %p218 = scmp.lt.s32.totalorder %s15, 1
          %s219 = scalar_select %p218, %s15, 1
          %s220 = smul.addr %s219, 2
          %s221 = smul.addr %s220, 8
          %s222 = scalar_lea.vmem %s1, %s221
        $region40: #{multi_head_memory_forward.1} parent=31 // pred_fallthru
          _
      $region32: #{multi_head_memory_forward.1} parent=5 // pred_fallthru
        _
      %p223 = scmp.le.s32.totalorder 1, %s15
      %p224 = scmp.lt.s32.totalorder %s15, 3
      %p225 = pnand %p223, %p224
      %p226 = pneg %p225
      // Predicated region
      $region41: #{multi_head_memory_forward.1} parent=5 // pred_check
        _
      $region42: #{multi_head_memory_forward.1} parent=5 // pred_check_branch
        %228 = sbr.rel (%p225) target = $region44
      $region43: #{multi_head_memory_forward.1} parent=5 // pred_region
        %s229 = ssub.s32 %s15, 1
        %p230 = scmp.lt.s32.totalorder %s20, 1
        %s231 = scalar_select %p230, %s20, 1
        %s232 = smul.addr %s231, 8
        %s233 = scalar_lea.vmem %s0, %s232
        %p234 = pneg %p41
        %p235 = pneg %p38
        %p236 = scmp.lt.s32.totalorder %s20, 1
        %s237 = scalar_select %p236, %s20, 1
        %s238 = smul.addr %s237, 2
        %s239 = smul.addr %s238, 8
        %s240 = scalar_lea.vmem %s1, %s239
        %p241 = pneg %p67
        %p242 = pneg %p64
        %p243 = pneg %p88
        %p244 = pneg %p85
        %p245 = pneg %p109
        %p246 = pneg %p106
        %p247 = pneg %p130
        %p248 = pneg %p127
        %p249 = pneg %p151
        %p250 = pneg %p148
        %p251 = pneg %p177
        %p252 = pneg %p174
        %s253 = sand.u32 %s164, 1
        %s254 = scalar_lea.sflag [#allocation3], %s253
        %s255 = sand.u32 %s164, 1
        %s256 = smul.addr %s255, 16
        %s257 = scalar_lea.vmem [#allocation2], %s256
        %p258 = scmp.lt.s32.totalorder %s20, 1
        %s259 = scalar_select %p258, %s20, 1
        %s260 = smul.addr %s259, 8
        %s261 = scalar_lea.vmem %s0, %s260
        %p262 = scmp.lt.s32.totalorder %s20, 1
        %s263 = scalar_select %p262, %s20, 1
        %s264 = smul.addr %s263, 2
        %s265 = smul.addr %s264, 8
        %s266 = scalar_lea.vmem %s1, %s265
        %v267 = vld [vmem:[%s261] sm:$0xff]
        %v268 = vld [vmem:[%s2] sm:$0xff]
        %v269 = vld [vmem:[%s2 + $0x8] sm:$0xff]
        %v270 = vld [vmem:[%s2 + $0x10] sm:$0xff]
        %v271 = vld [vmem:[%s2 + $0x18] sm:$0xff]
        %v272 = vld [vmem:[%s2 + $0x20] sm:$0xff]
        %v273 = vld [vmem:[%s2 + $0x28] sm:$0xff]
        %v274 = vld [vmem:[%s2 + $0x30] sm:$0xff]
        %v275 = vld [vmem:[%s2 + $0x38] sm:$0xff]
        %v276 = vld [vmem:[%s2 + $0x40] sm:$0xff]
        %v277 = vld [vmem:[%s2 + $0x48] sm:$0xff]
        %v278 = vld [vmem:[%s2 + $0x50] sm:$0xff]
        %v279 = vld [vmem:[%s2 + $0x58] sm:$0xff]
        %v280 = vld [vmem:[%s2 + $0x60] sm:$0xff]
        %v281 = vld [vmem:[%s2 + $0x68] sm:$0xff]
        %v282 = vld [vmem:[%s2 + $0x70] sm:$0xff]
        %v283 = vld [vmem:[%s2 + $0x78] sm:$0xff]
        %284 = vmatpush.msra.mxu0 %v283
        %285 = vmatpush.msra.mxu0 %v282
        %286 = vmatpush.msra.mxu0 %v281
        %287 = vmatpush.msra.mxu0 %v280
        %288 = vmatpush.msra.mxu0 %v279
        %289 = vmatpush.msra.mxu0 %v278
        %290 = vmatpush.msra.mxu0 %v277
        %291 = vmatpush.msra.mxu0 %v276
        %292 = vmatpush.msra.mxu0 %v275
        %293 = vmatpush.msra.mxu0 %v274
        %294 = vmatpush.msra.mxu0 %v273
        %295 = vmatpush.msra.mxu0 %v272
        %296 = vmatpush.msra.mxu0 %v271
        %297 = vmatpush.msra.mxu0 %v270
        %298 = vmatpush.msra.mxu0 %v269
        %299 = vmatpush.msra.mxu0 %v268
        %300 = vmatmul.f32.gmra.mxu0 %v267
        %v301 = vpop.f32.mrf.mxu0
        %v302 = vadd.f32 0.0, %v301
        %303 = vdwg.mxu0
        %v304 = vld [vmem:[%s3] sm:$0xff]
        %v305 = vld [vmem:[%s3 + $0x8] sm:$0xff]
        %306 = vmatpush.xpose.msra.mxu0 0.0
        %307 = vmatpush.xpose.msra.mxu0 0.0
        %308 = vmatpush.xpose.msra.mxu0 0.0
        %309 = vmatpush.xpose.msra.mxu0 0.0
        %310 = vmatpush.xpose.msra.mxu0 0.0
        %311 = vmatpush.xpose.msra.mxu0 0.0
        %312 = vmatpush.xpose.msra.mxu0 0.0
        %313 = vmatpush.xpose.msra.mxu0 0.0
        %314 = vmatpush.xpose.msra.mxu0 0.0
        %315 = vmatpush.xpose.msra.mxu0 0.0
        %316 = vmatpush.xpose.msra.mxu0 0.0
        %317 = vmatpush.xpose.msra.mxu0 0.0
        %318 = vmatpush.xpose.msra.mxu0 0.0
        %319 = vmatpush.xpose.msra.mxu0 0.0
        %320 = vmatpush.xpose.msra.mxu0 0.0
        %321 = vmatpush.xpose.msra.mxu0 %v302
        %322 = vmatmul.f32.gmra.mxu0 %v304
        %v323 = vpop.f32.mrf.mxu0
        %v324 = vadd.f32 0.0, %v323
        %325 = vmatmul.f32.gmra.mxu0 %v305
        %v326 = vpop.f32.mrf.mxu0
        %v327 = vadd.f32 0.0, %v326
        %328 = vdwg.mxu0
        %v329 = vlaneseq
        %v330 = vand.u32 %v329, 127
        %vm331 = vcmp.lt.s32.totalorder %v330, 3
        %v332 = vsel %vm331, %v324, -inf
        %v333 = vsel %vm331, %v327, -inf
        %vm334 = vcmask 64512
        %v335 = vsel %vm334, %v332, -inf
        %336 = vmax.xlane.f32.xlu0 %v335
        %v337 = vpop.xlane.xlu0 %336
        %v338 = vsel %vm334, %v333, -inf
        %339 = vmax.xlane.f32.xlu0 %v338
        %v340 = vpop.xlane.xlu0 %339
        %v341 = vsub.f32 %v332, %v337
        %v342 = vsub.f32 %v333, %v340
        %v343 = vmul.f32 %v341, 1.442695
        %v344 = vpow.pop %v343
        %v345 = vmul.f32 %v342, 1.442695
        %v346 = vpow.pop %v345
        %v347 = vsel %vm334, %v344, 0.0
        %348 = vadd.xlane.f32.xlu0 %v347
        %v349 = vpop.xlane.xlu0 %348
        %v350 = vsel %vm334, %v346, 0.0
        %351 = vadd.xlane.f32.xlu0 %v350
        %v352 = vpop.xlane.xlu0 %351
        %v353 = vrcp.pop %v349
        %v354 = vmul.f32 %v349, %v353
        %v355 = vsub.f32 1.0, %v354
        %v356 = vmul.f32 %v353, %v355
        %v357 = vadd.f32 %v353, %v356
        %vm358 = vweird.f32 %v349
        %vm359 = vweird.f32 %v353
        %vm360 = vmor %vm358, %vm359
        %v361 = vsel %vm360, %v353, %v357
        %v362 = vand.u32 2147483647, %v349
        %vm363 = vcmp.eq.f32.partialorder %v362, 8.507059e+37
        %v364 = vand.u32 %v349, 2147483648
        %v365 = vor.u32 1.1754944e-38, %v364
        %v366 = vsel %vm363, %v365, %v361
        %v367 = vmul.f32 %v344, %v366
        %v368 = vrcp.pop %v352
        %v369 = vmul.f32 %v352, %v368
        %v370 = vsub.f32 1.0, %v369
        %v371 = vmul.f32 %v368, %v370
        %v372 = vadd.f32 %v368, %v371
        %vm373 = vweird.f32 %v352
        %vm374 = vweird.f32 %v368
        %vm375 = vmor %vm373, %vm374
        %v376 = vsel %vm375, %v368, %v372
        %v377 = vand.u32 2147483647, %v352
        %vm378 = vcmp.eq.f32.partialorder %v377, 8.507059e+37
        %v379 = vand.u32 %v352, 2147483648
        %v380 = vor.u32 1.1754944e-38, %v379
        %v381 = vsel %vm378, %v380, %v376
        %v382 = vmul.f32 %v346, %v381
        %384 = vrot.lane.b32.xlu0 %v302, 64
        %v385 = vpop.permute.xlu0 %384
        %v388 = vsel %vm334, %v367, 0
        %390 = vmatpush.msra.mxu0 0.0
        %391 = vmatpush.msra.mxu0 0.0
        %392 = vmatpush.msra.mxu0 0.0
        %393 = vmatpush.msra.mxu0 0.0
        %394 = vmatpush.msra.mxu0 0.0
        %395 = vmatpush.msra.mxu0 0.0
        %396 = vmatpush.msra.mxu0 0.0
        %397 = vmatpush.msra.mxu0 0.0
        %398 = vmatpush.msra.mxu0 0.0
        %399 = vmatpush.msra.mxu0 0.0
        %400 = vmatpush.msra.mxu0 0.0
        %401 = vmatpush.msra.mxu0 0.0
        %402 = vmatpush.msra.mxu0 0.0
        %403 = vmatpush.msra.mxu0 0.0
        %404 = vmatpush.msra.mxu0 0.0
        %405 = vmatpush.msra.mxu0 %v385
        %406 = vmatmul.f32.gmra.mxu0 %v388
        %v407 = vpop.f32.mrf.mxu0
        %v408 = vadd.f32 0.0, %v407
        %409 = vdwg.mxu0
        %410 = vrot.lane.b32.xlu0 %v302, 32
        %v411 = vpop.permute.xlu0 %410
        %v414 = vsel %vm334, %v382, 0
        %416 = vmatpush.msra.mxu0 0.0
        %417 = vmatpush.msra.mxu0 0.0
        %418 = vmatpush.msra.mxu0 0.0
        %419 = vmatpush.msra.mxu0 0.0
        %420 = vmatpush.msra.mxu0 0.0
        %421 = vmatpush.msra.mxu0 0.0
        %422 = vmatpush.msra.mxu0 0.0
        %423 = vmatpush.msra.mxu0 0.0
        %424 = vmatpush.msra.mxu0 0.0
        %425 = vmatpush.msra.mxu0 0.0
        %426 = vmatpush.msra.mxu0 0.0
        %427 = vmatpush.msra.mxu0 0.0
        %428 = vmatpush.msra.mxu0 0.0
        %429 = vmatpush.msra.mxu0 0.0
        %430 = vmatpush.msra.mxu0 0.0
        %431 = vmatpush.msra.mxu0 %v411
        %432 = vmatmul.f32.gmra.mxu0 %v414
        %v433 = vpop.f32.mrf.mxu0
        %v434 = vadd.f32 0.0, %v433
        %435 = vdwg.mxu0
        %v436 = vld [vmem:[%s266] sm:$0xff]
        %v437 = vld [vmem:[%s266 + $0x8] sm:$0xff]
        %v438 = vld [vmem:[%s4] sm:$0xff]
        %v439 = vld [vmem:[%s4 + $0x8] sm:$0xff]
        %v440 = vld [vmem:[%s5] sm:$0xff]
        %v441 = vld [vmem:[%s5 + $0x8] sm:$0xff]
        %v442 = vmul.f32 %v408, %v408
        %v443 = vmul.f32 %v434, %v434
        %vm444 = vcmask 261120
        %v445 = vsel %vm444, %v442, 0.0
        %446 = vadd.xlane.f32.xlu0 %v445
        %v447 = vpop.xlane.xlu0 %446
        %v448 = vsel %vm444, %v443, 0.0
        %449 = vadd.xlane.f32.xlu0 %v448
        %v450 = vpop.xlane.xlu0 %449
        %v451 = vrot.slane %v447, 4
        %v452 = vadd.f32 %v447, %v451
        %v453 = vrot.slane %v452, 2
        %v454 = vadd.f32 %v452, %v453
        %v455 = vrot.slane %v454, 1
        %v456 = vadd.f32 %v454, %v455
        %v457 = vrot.slane %v450, 4
        %v458 = vadd.f32 %v450, %v457
        %v459 = vrot.slane %v458, 2
        %v460 = vadd.f32 %v458, %v459
        %v461 = vrot.slane %v460, 1
        %v462 = vadd.f32 %v460, %v461
        %v463 = vmul.f32 %v456, 0.00390625
        %v464 = vmul.f32 %v462, 0.00390625
        %v465 = vadd.f32 %v463, 1.1920929e-07
        %v466 = vadd.f32 %v464, 1.1920929e-07
        %v467 = vrsqrt.pop %v465
        %v468 = vmul.f32 %v467, %v465
        %v469 = vmul.f32 %v468, %v467
        %v470 = vmul.f32 0.5, %v469
        %v471 = vsub.f32 1.5, %v470
        %v472 = vmul.f32 %v467, %v471
        %vm473 = vweird.f32 %v465
        %vm474 = vweird.f32 %v467
        %vm475 = vmor %vm473, %vm474
        %v476 = vsel %vm475, %v467, %v472
        %v477 = vrsqrt.pop %v466
        %v478 = vmul.f32 %v477, %v466
        %v479 = vmul.f32 %v478, %v477
        %v480 = vmul.f32 0.5, %v479
        %v481 = vsub.f32 1.5, %v480
        %v482 = vmul.f32 %v477, %v481
        %vm483 = vweird.f32 %v466
        %vm484 = vweird.f32 %v477
        %vm485 = vmor %vm483, %vm484
        %v486 = vsel %vm485, %v477, %v482
        %v487 = vmul.f32 %v408, %v476
        %v488 = vmul.f32 %v434, %v486
        %v489 = vmul.f32 %v487, %v438
        %v490 = vmul.f32 %v488, %v439
        %v491 = vadd.f32 %v436, %v489
        %v492 = vadd.f32 %v437, %v490
        %v493 = vmul.f32 %v491, %v491
        %v494 = vmul.f32 %v492, %v492
        %v495 = vsel %vm444, %v493, 0.0
        %496 = vadd.xlane.f32.xlu0 %v495
        %v497 = vpop.xlane.xlu0 %496
        %v498 = vsel %vm444, %v494, 0.0
        %499 = vadd.xlane.f32.xlu0 %v498
        %v500 = vpop.xlane.xlu0 %499
        %v501 = vrot.slane %v497, 4
        %v502 = vadd.f32 %v497, %v501
        %v503 = vrot.slane %v502, 2
        %v504 = vadd.f32 %v502, %v503
        %v505 = vrot.slane %v504, 1
        %v506 = vadd.f32 %v504, %v505
        %v507 = vrot.slane %v500, 4
        %v508 = vadd.f32 %v500, %v507
        %v509 = vrot.slane %v508, 2
        %v510 = vadd.f32 %v508, %v509
        %v511 = vrot.slane %v510, 1
        %v512 = vadd.f32 %v510, %v511
        %v513 = vmul.f32 %v506, 0.00390625
        %v514 = vmul.f32 %v512, 0.00390625
        %v515 = vadd.f32 %v513, 1.1920929e-07
        %v516 = vadd.f32 %v514, 1.1920929e-07
        %v517 = vrsqrt.pop %v515
        %v518 = vmul.f32 %v517, %v515
        %v519 = vmul.f32 %v518, %v517
        %v520 = vmul.f32 0.5, %v519
        %v521 = vsub.f32 1.5, %v520
        %v522 = vmul.f32 %v517, %v521
        %vm523 = vweird.f32 %v515
        %vm524 = vweird.f32 %v517
        %vm525 = vmor %vm523, %vm524
        %v526 = vsel %vm525, %v517, %v522
        %v527 = vrsqrt.pop %v516
        %v528 = vmul.f32 %v527, %v516
        %v529 = vmul.f32 %v528, %v527
        %v530 = vmul.f32 0.5, %v529
        %v531 = vsub.f32 1.5, %v530
        %v532 = vmul.f32 %v527, %v531
        %vm533 = vweird.f32 %v516
        %vm534 = vweird.f32 %v527
        %vm535 = vmor %vm533, %vm534
        %v536 = vsel %vm535, %v527, %v532
        %v537 = vmul.f32 %v491, %v526
        %v538 = vmul.f32 %v492, %v536
        %v539 = vmul.f32 %v537, %v440
        %v540 = vmul.f32 %v538, %v441
        %541 = vst.msk [vmem:[%s257] sm:$0xff] %vm444, %v539
        %542 = vst.msk [vmem:[%s257 + $0x8] sm:$0xff] %vm444, %v540
        %s543 = sand.u32 %s164, 1
        %s544 = scalar_lea.sflag [#allocation3], %s543
        %s545 = sand.u32 %s164, 1
        %s546 = smul.addr %s545, 16
        %s547 = scalar_lea.vmem [#allocation2], %s546
        // Predicated region
        $region45: #{multi_head_memory_forward.1} parent=43 // pred_check
          %p548 = pneg %p174
        $region46: #{multi_head_memory_forward.1} parent=43 // pred_check_branch
          %550 = sbr.rel (%p548) target = $region48
        $region47: #{multi_head_memory_forward.1} parent=43 // pred_region
          %552 = vsyncadd %s544, 0
          %s553 = smul.addr %s20, 2
          %s554 = smul.addr %s553, 8
          %s555 = scalar_lea.hbm %s6, %s554
          %s556 = sshll.u32 %s547, 4
          %s557 = int_to_ptr.vmem [resolvable:$true] %s556
          %s558 = sshll.u32 %s555, 4
          %s559 = int_to_ptr.hbm [resolvable:$true] %s558
          %564 = dma.vmem_to_hbm [thread:$0]  %s557, 256, %s559, %s544, 128, 128, 8
        $region48: #{multi_head_memory_forward.1} parent=43 // pred_fallthru
          _
      $region44: #{multi_head_memory_forward.1} parent=5 // pred_fallthru
        _
      %p565 = scmp.le.s32.totalorder 2, %s15
      // Predicated region
      $region49: #{multi_head_memory_forward.1} parent=5 // pred_check
        %p566 = pneg %p565
      $region50: #{multi_head_memory_forward.1} parent=5 // pred_check_branch
        %568 = sbr.rel (%p566) target = $region52
      $region51: #{multi_head_memory_forward.1} parent=5 // pred_region
        %s569 = ssub.s32 %s15, 2
        // Predicated region
        $region53: #{multi_head_memory_forward.1} parent=51 // pred_check
          %p570 = pneg %p180
        $region54: #{multi_head_memory_forward.1} parent=51 // pred_check_branch
          %572 = sbr.rel (%p570) target = $region56
        $region55: #{multi_head_memory_forward.1} parent=51 // pred_region
          %s573 = sand.u32 %s165, 1
          %s574 = scalar_lea.sflag [#allocation3], %s573
          %s575 = sand.u32 %s165, 1
          %s576 = smul.addr %s575, 16
          %s577 = scalar_lea.vmem [#allocation2], %s576
          %579 = dma.done %s574, 256
        $region56: #{multi_head_memory_forward.1} parent=51 // pred_fallthru
          _
      $region52: #{multi_head_memory_forward.1} parent=5 // pred_fallthru
        _
    $region6: #{multi_head_memory_forward.1} parent=1 // loop_footer
      %s19 = sadd.s32 1, %s15
    $region7: #{multi_head_memory_forward.1} parent=1 // loop_footer_branch
      %14 = sbr.rel target = $region3
    $region8: #{multi_head_memory_forward.1} parent=1 // loop_exit
      _
    %580 = vsyncpa [#allocation3], 1
    %s581 = scalar_lea.sflag [#allocation3], 1
    %582 = vsyncpa %s581, 1

</llo_original>
